<compile_context>
chip_gen: v7x
topology: tpu7x:2x2x1
jax: 0.10.0
libtpu: 0.0.40
codegen_flags: <defaults>
</compile_context>

<pallas_src>
import jax
import jax.numpy as jnp
import numpy as np
from jax.experimental import pallas as pl
from jax.experimental.pallas import tpu as pltpu


def _hadamard_mlp_kernel(xi_ref, xj_ref, w1_ref, b1_ref, w2_ref, b2_ref, out_ref):
    f32 = jnp.float32

    # Hadamard product fused in-kernel (VPU, free under the DMA stream).
    x = xi_ref[...] * xj_ref[...]                                   # [TE, H]

    # W1 -> ReLU  (f32 accumulation on the MXU).
    h = jnp.dot(x, w1_ref[...], preferred_element_type=f32) + b1_ref[...]
    h = jnp.maximum(h, 0.0)
    # TODO(synk): nn.Dropout is identity in eval mode; training-mode dropout
    # (pltpu.prng_*) is not implemented.

    # W2 (h_feats -> 1).
    out = jnp.dot(h.astype(w2_ref.dtype), w2_ref[...],
                  preferred_element_type=f32) + b2_ref[...]         # [TE, 1]
    out_ref[...] = out.astype(out_ref.dtype)


def hadamard_mlp_forward(x_i, x_j, params, *, edge_tile=256,
                         compute_dtype=jnp.float32):
    """Pallas implementation of Hadamard_MLPPredictor.forward (eval mode).

    x_i, x_j : [E, h_feats]   params: w1 [H,H], b1 [1,H], w2 [H,1], b2 [1,1]
    Returns  : [E]            (matches torch `x.squeeze()`)
    """
    assert edge_tile % 8 == 0, "edge_tile must be a multiple of 8 (sublanes)"
    E, H = x_i.shape

    # Streams in compute_dtype (bf16 halves HBM bytes); biases stay f32 since
    # they are added to the f32 dot result.
    x_i = x_i.astype(compute_dtype)
    x_j = x_j.astype(compute_dtype)
    w1 = params["w1"].astype(compute_dtype)
    w2 = params["w2"].astype(compute_dtype)
    b1 = params["b1"].astype(jnp.float32)
    b2 = params["b2"].astype(jnp.float32)

    # Pad E up to a tile multiple; rows are independent so padding is safe.
    n_tiles = pl.cdiv(E, edge_tile)
    E_pad = n_tiles * edge_tile
    if E_pad != E:
        pad = E_pad - E
        x_i = jnp.pad(x_i, ((0, pad), (0, 0)))
        x_j = jnp.pad(x_j, ((0, pad), (0, 0)))

    edge_map = lambda e: (e, 0)
    full_map = lambda e: (0, 0)

    out = pl.pallas_call(
        _hadamard_mlp_kernel,
        out_shape=jax.ShapeDtypeStruct((E_pad, 1), jnp.float32),
        grid_spec=pltpu.PrefetchScalarGridSpec(
            num_scalar_prefetch=0,
            grid=(n_tiles,),
            in_specs=[
                pl.BlockSpec((edge_tile, H), edge_map),   # x_i tile
                pl.BlockSpec((edge_tile, H), edge_map),   # x_j tile
                pl.BlockSpec(w1.shape, full_map),         # W1  [H, H]
                pl.BlockSpec(b1.shape, full_map),         # b1  [1, H]
                pl.BlockSpec(w2.shape, full_map),         # W2  [H, 1]
                pl.BlockSpec(b2.shape, full_map),         # b2  [1, 1]
            ],
            out_specs=pl.BlockSpec((edge_tile, 1), edge_map),
        ),
        compiler_params=pltpu.CompilerParams(
            dimension_semantics=("parallel",),
            vmem_limit_bytes=32 * 1024 * 1024,
        ),
    )(x_i, x_j, w1, b1, w2, b2)

    # Drop padded rows and squeeze the size-1 feature dim (torch `.squeeze()`).
    return out[:E, 0]


def _ref_forward(x_i, x_j, p):
    """Pure-JAX reference mirroring the PyTorch module (eval mode)."""
    x = x_i * x_j
    h = jnp.maximum(x @ p["w1"] + p["b1"], 0.0)
    return (h @ p["w2"] + p["b2"])[:, 0]


def _linear_params(key, fan_in, fan_out):
    """PyTorch nn.Linear default init (uniform +-1/sqrt(fan_in)), W stored [in,out]."""
    kw, kb = jax.random.split(key)
    bound = 1.0 / np.sqrt(fan_in)
    w = jax.random.uniform(kw, (fan_in, fan_out), jnp.float32, -bound, bound)
    b = jax.random.uniform(kb, (1, fan_out), jnp.float32, -bound, bound)
    return w, b


if __name__ == "__main__":
    # Small deterministic problem: E edges, h_feats hidden width.
    H_FEATS, E = 32, 300          # E not a tile multiple -> exercises padding
    DROPOUT = 0.2                 # unused in eval mode

    root = jax.random.PRNGKey(0)
    keys = jax.random.split(root, 4)

    x_i = jax.random.normal(keys[0], (E, H_FEATS), jnp.float32)
    x_j = jax.random.normal(keys[1], (E, H_FEATS), jnp.float32)

    params = {}
    params["w1"], params["b1"] = _linear_params(keys[2], H_FEATS, H_FEATS)  # W1
    params["w2"], params["b2"] = _linear_params(keys[3], H_FEATS, 1)        # W2

    # f32 path: exact check against the pure-JAX reference.
    out = hadamard_mlp_forward(x_i, x_j, params, edge_tile=256)
    out = jax.block_until_ready(out)
    ref = _ref_forward(x_i, x_j, params)
    np.testing.assert_allclose(np.asarray(out), np.asarray(ref),
                               rtol=1e-5, atol=1e-5)

    # bf16 streaming path (perf-feedback option): half HBM bytes, f32 accumulation.
    out_bf16 = hadamard_mlp_forward(x_i, x_j, params, edge_tile=256,
                                    compute_dtype=jnp.bfloat16)
    out_bf16 = jax.block_until_ready(out_bf16)
    np.testing.assert_allclose(np.asarray(out_bf16), np.asarray(ref),
                               rtol=5e-2, atol=5e-2)

    print("KERNEL_OK")
</pallas_src>

<mosaic_0001>
module attributes {stable_mosaic.version = 11 : i64} {
  func.func @_hadamard_mlp_kernel(%arg0: i32, %arg1: memref<256x32xf32, #tpu.memory_space<vmem>>, %arg2: memref<256x32xf32, #tpu.memory_space<vmem>>, %arg3: memref<32x32xf32, #tpu.memory_space<vmem>>, %arg4: memref<1x32xf32, #tpu.memory_space<vmem>>, %arg5: memref<32x1xf32, #tpu.memory_space<vmem>>, %arg6: memref<1x1xf32, #tpu.memory_space<vmem>>, %arg7: memref<256x1xf32, #tpu.memory_space<vmem>>) attributes {dimension_semantics = [#tpu.dimension_semantics<parallel>], iteration_bounds = array<i64: 2>, scalar_prefetch = 0 : i64, scratch_operands = 0 : i64, tpu.core_type = #tpu.core_type<tc>, window_params = [{transform_indices = @transform_0, window_bounds = array<i64: 256, 32>}, {transform_indices = @transform_1, window_bounds = array<i64: 256, 32>}, {pipeline_mode = #tpu.pipeline_mode<synchronous>, transform_indices = @transform_2, window_bounds = array<i64: 32, 32>}, {pipeline_mode = #tpu.pipeline_mode<synchronous>, transform_indices = @transform_3, window_bounds = array<i64: 1, 32>}, {pipeline_mode = #tpu.pipeline_mode<synchronous>, transform_indices = @transform_4, window_bounds = array<i64: 32, 1>}, {pipeline_mode = #tpu.pipeline_mode<synchronous>, transform_indices = @transform_5, window_bounds = array<i64: 1, 1>}, {transform_indices = @transform_6, window_bounds = array<i64: 256, 1>}]} {
    %c0 = arith.constant 0 : index
    %c0_0 = arith.constant 0 : index
    %0 = vector.load %arg1[%c0, %c0_0] : memref<256x32xf32, #tpu.memory_space<vmem>>, vector<256x32xf32>
    %c0_1 = arith.constant 0 : index
    %c0_2 = arith.constant 0 : index
    %1 = vector.load %arg2[%c0_1, %c0_2] : memref<256x32xf32, #tpu.memory_space<vmem>>, vector<256x32xf32>
    %2 = arith.mulf %0, %1 : vector<256x32xf32>
    %c0_3 = arith.constant 0 : index
    %c0_4 = arith.constant 0 : index
    %3 = vector.load %arg3[%c0_3, %c0_4] : memref<32x32xf32, #tpu.memory_space<vmem>>, vector<32x32xf32>
    %cst = arith.constant dense<0.000000e+00> : vector<256x32xf32>
    %4 = tpu.matmul %2, %3, %cst {dimension_numbers = #tpu.dot_dimension_numbers<[1], [0], [0], [1], [0, 0, 1, 1], [], []>} : vector<256x32xf32>, vector<32x32xf32>, vector<256x32xf32> -> vector<256x32xf32>
    %c0_5 = arith.constant 0 : index
    %c0_6 = arith.constant 0 : index
    %5 = vector.load %arg4[%c0_5, %c0_6] : memref<1x32xf32, #tpu.memory_space<vmem>>, vector<1x32xf32>
    %6 = vector.broadcast %5 : vector<1x32xf32> to vector<256x32xf32>
    %7 = arith.addf %4, %6 : vector<256x32xf32>
    %cst_7 = arith.constant 0.000000e+00 : f32
    %8 = vector.broadcast %cst_7 : f32 to vector<256x32xf32>
    %9 = arith.maximumf %7, %8 : vector<256x32xf32>
    %c0_8 = arith.constant 0 : index
    %c0_9 = arith.constant 0 : index
    %10 = vector.load %arg5[%c0_8, %c0_9] : memref<32x1xf32, #tpu.memory_space<vmem>>, vector<32x1xf32>
    %cst_10 = arith.constant dense<0.000000e+00> : vector<256x1xf32>
    %11 = tpu.matmul %9, %10, %cst_10 {dimension_numbers = #tpu.dot_dimension_numbers<[1], [0], [0], [1], [0, 0, 1, 1], [], []>} : vector<256x32xf32>, vector<32x1xf32>, vector<256x1xf32> -> vector<256x1xf32>
    %c0_11 = arith.constant 0 : index
    %c0_12 = arith.constant 0 : index
    %12 = vector.load %arg6[%c0_11, %c0_12] : memref<1x1xf32, #tpu.memory_space<vmem>>, vector<1x1xf32>
    %13 = vector.broadcast %12 : vector<1x1xf32> to vector<256x1xf32>
    %14 = arith.addf %11, %13 : vector<256x1xf32>
    %c0_13 = arith.constant 0 : index
    %c0_14 = arith.constant 0 : index
    %15 = vector.load %arg7[%c0_13, %c0_14] : memref<256x1xf32, #tpu.memory_space<vmem>>, vector<256x1xf32>
    tpu.vector_store %arg7[%c0_13, %c0_14], %14 {strides = array<i32>} : memref<256x1xf32, #tpu.memory_space<vmem>>, vector<256x1xf32>,
    return
  }
  func.func @transform_0(%arg0: i32) -> (i32, i32) {
    %c0_i32 = arith.constant 0 : i32
    %c0_i32_0 = arith.constant 0 : i32
    return %arg0, %c0_i32 : i32, i32
  }
  func.func @transform_1(%arg0: i32) -> (i32, i32) {
    %c0_i32 = arith.constant 0 : i32
    %c0_i32_0 = arith.constant 0 : i32
    return %arg0, %c0_i32 : i32, i32
  }
  func.func @transform_2(%arg0: i32) -> (i32, i32) {
    %c0_i32 = arith.constant 0 : i32
    %c0_i32_0 = arith.constant 0 : i32
    %c0_i32_1 = arith.constant 0 : i32
    return %c0_i32, %c0_i32_0 : i32, i32
  }
  func.func @transform_3(%arg0: i32) -> (i32, i32) {
    %c0_i32 = arith.constant 0 : i32
    %c0_i32_0 = arith.constant 0 : i32
    %c0_i32_1 = arith.constant 0 : i32
    return %c0_i32, %c0_i32_0 : i32, i32
  }
  func.func @transform_4(%arg0: i32) -> (i32, i32) {
    %c0_i32 = arith.constant 0 : i32
    %c0_i32_0 = arith.constant 0 : i32
    %c0_i32_1 = arith.constant 0 : i32
    return %c0_i32, %c0_i32_0 : i32, i32
  }
  func.func @transform_5(%arg0: i32) -> (i32, i32) {
    %c0_i32 = arith.constant 0 : i32
    %c0_i32_0 = arith.constant 0 : i32
    %c0_i32_1 = arith.constant 0 : i32
    return %c0_i32, %c0_i32_0 : i32, i32
  }
  func.func @transform_6(%arg0: i32) -> (i32, i32) {
    %c0_i32 = arith.constant 0 : i32
    %c0_i32_0 = arith.constant 0 : i32
    return %arg0, %c0_i32 : i32, i32
  }
}

</mosaic_0001>

<llo_original>
// kernel: tpu_custom_call.1
$region0: #{tpu_custom_call.1}
  #allocation0 [shape = 'u32[]', space=smem, size = 0x4, offset = 0x4, fixed_abs, tag = 'smem constant byte address 0x4 - core index']
  #allocation1 [shape = 'u32[144,128]{1,0:T(1,128)}', space=vmem, size = 0x12000, scoped, tag = 'internal scratch']
  #allocation2 [shape = 'f32[1,1]{1,0:T(1,128)S(1)}', space=vmem, size = 0x200, scoped, tag = 'scoped memory for tpu_custom_call.1']
  %s0 = inlined_call_operand.vmem [shape: f32[512,32], index: 0, kind: input, shape index: {}]
  %s1 = inlined_call_operand.vmem [shape: f32[512,32], index: 1, kind: input, shape index: {}]
  %s2 = inlined_call_operand.vmem [shape: f32[32,32], index: 2, kind: input, shape index: {}]
  %s3 = inlined_call_operand.vmem [shape: f32[1,32], index: 3, kind: input, shape index: {}]
  %s4 = inlined_call_operand.vmem [shape: f32[32,1], index: 4, kind: input, shape index: {}]
  %s5 = inlined_call_operand.<no memory space> [shape: f32[1,1], index: 5, kind: input, shape index: {}]
  %s6 = inlined_call_operand.vmem [shape: f32[512,1], index: 6, kind: output, shape index: {}]
  %s7 = sld [smem:[#allocation0]]
  $region57: #{tpu_custom_call.1} parent=0
    _
  %s9 = ssub.s32 1, %s7
  %s10 = scalar_select 0, %s9, %s7
  %v11 = vstv %s5
  %12 = vst [vmem:[#allocation2] sm:$0x1] %v11
  loop: start=0, step=1, limit=4
  $region2: #{tpu_custom_call.1} parent=0 // loop_pre_header
    _
  $region3: #{tpu_custom_call.1} parent=0 // loop_header
    %s14 = sphi 0, %s18
    %p15 = scmp.ge.s32.totalorder %s14, 4
    %s24 = sphi 0, %s26
    %s27 = sphi 0, %s24
    %s28 = sphi 0, %s27
    %s44 = sphi 0, %s28
    %s50 = sphi 0, %s52
    %s53 = sphi 0, %s50
    %s54 = sphi 0, %s53
    %s70 = sphi 0, %s54
    %s74 = sphi 0, %s74
    %s76 = sphi 0, %s74
    %s77 = sphi 0, %s76
    %s91 = sphi 0, %s77
    %s95 = sphi 0, %s95
    %s97 = sphi 0, %s95
    %s98 = sphi 0, %s97
    %s112 = sphi 0, %s98
    %s116 = sphi 0, %s116
    %s118 = sphi 0, %s116
    %s119 = sphi 0, %s118
    %s133 = sphi 0, %s119
    %s137 = sphi 0, %s137
    %s139 = sphi 0, %s137
    %s140 = sphi 0, %s139
    %s154 = sphi 0, %s140
    %s160 = sphi 0, %s162
    %s163 = sphi 0, %s160
    %s164 = sphi 0, %s163
    %s180 = sphi 0, %s164
  $region4: #{tpu_custom_call.1} parent=0 // loop_header_branch
    %17 = sbr.rel (%p15) target = $region8
  $region5: #{tpu_custom_call.1} parent=0 // loop_body
    %s19 = ssub.s32 %s14, 1
    %s20 = ssub.s32 %s14, 2
    %s21 = sadd.s32 %s14, 1
    %s22 = ssub.s32 %s14, %s21
    %p23 = scmp.eq.s32.totalorder %s22, 0
    %s25 = sadd.s32 %s24, 1
    %s26 = scalar_select %p23, %s24, %s25
    %p29 = pneg %p23
    %p30 = scmp.eq.s32.totalorder %s14, 1
    %p31 = por %p29, %p30
    %p32 = scmp.ne.s32.totalorder %s24, %s27
    %p33 = scmp.eq.s32.totalorder %s14, 0
    %p34 = por %p32, %p33
    %p35 = scmp.ne.s32.totalorder %s24, %s27
    %p36 = scmp.eq.s32.totalorder %s19, 1
    %p37 = por %p35, %p36
    %p38 = scmp.ne.s32.totalorder %s27, %s28
    %p39 = scmp.eq.s32.totalorder %s19, 0
    %p40 = por %p38, %p39
    %p41 = scmp.ne.s32.totalorder %s27, %s28
    %p42 = scmp.eq.s32.totalorder %s20, 1
    %p43 = por %p41, %p42
    %p45 = scmp.ne.s32.totalorder %s28, %s44
    %p46 = scmp.eq.s32.totalorder %s20, 0
    %p47 = por %p45, %p46
    %s48 = ssub.s32 %s14, %s21
    %p49 = scmp.eq.s32.totalorder %s48, 0
    %s51 = sadd.s32 %s50, 1
    %s52 = scalar_select %p49, %s50, %s51
    %p55 = pneg %p49
    %p56 = scmp.eq.s32.totalorder %s14, 1
    %p57 = por %p55, %p56
    %p58 = scmp.ne.s32.totalorder %s50, %s53
    %p59 = scmp.eq.s32.totalorder %s14, 0
    %p60 = por %p58, %p59
    %p61 = scmp.ne.s32.totalorder %s50, %s53
    %p62 = scmp.eq.s32.totalorder %s19, 1
    %p63 = por %p61, %p62
    %p64 = scmp.ne.s32.totalorder %s53, %s54
    %p65 = scmp.eq.s32.totalorder %s19, 0
    %p66 = por %p64, %p65
    %p67 = scmp.ne.s32.totalorder %s53, %s54
    %p68 = scmp.eq.s32.totalorder %s20, 1
    %p69 = por %p67, %p68
    %p71 = scmp.ne.s32.totalorder %s54, %s70
    %p72 = scmp.eq.s32.totalorder %s20, 0
    %p73 = por %p71, %p72
    %s75 = sadd.s32 %s74, 1
    %p78 = scmp.eq.s32.totalorder %s14, 1
    %p79 = scmp.ne.s32.totalorder %s74, %s76
    %p80 = scmp.eq.s32.totalorder %s14, 0
    %p81 = por %p79, %p80
    %p82 = scmp.ne.s32.totalorder %s74, %s76
    %p83 = scmp.eq.s32.totalorder %s19, 1
    %p84 = por %p82, %p83
    %p85 = scmp.ne.s32.totalorder %s76, %s77
    %p86 = scmp.eq.s32.totalorder %s19, 0
    %p87 = por %p85, %p86
    %p88 = scmp.ne.s32.totalorder %s76, %s77
    %p89 = scmp.eq.s32.totalorder %s20, 1
    %p90 = por %p88, %p89
    %p92 = scmp.ne.s32.totalorder %s77, %s91
    %p93 = scmp.eq.s32.totalorder %s20, 0
    %p94 = por %p92, %p93
    %s96 = sadd.s32 %s95, 1
    %p99 = scmp.eq.s32.totalorder %s14, 1
    %p100 = scmp.ne.s32.totalorder %s95, %s97
    %p101 = scmp.eq.s32.totalorder %s14, 0
    %p102 = por %p100, %p101
    %p103 = scmp.ne.s32.totalorder %s95, %s97
    %p104 = scmp.eq.s32.totalorder %s19, 1
    %p105 = por %p103, %p104
    %p106 = scmp.ne.s32.totalorder %s97, %s98
    %p107 = scmp.eq.s32.totalorder %s19, 0
    %p108 = por %p106, %p107
    %p109 = scmp.ne.s32.totalorder %s97, %s98
    %p110 = scmp.eq.s32.totalorder %s20, 1
    %p111 = por %p109, %p110
    %p113 = scmp.ne.s32.totalorder %s98, %s112
    %p114 = scmp.eq.s32.totalorder %s20, 0
    %p115 = por %p113, %p114
    %s117 = sadd.s32 %s116, 1
    %p120 = scmp.eq.s32.totalorder %s14, 1
    %p121 = scmp.ne.s32.totalorder %s116, %s118
    %p122 = scmp.eq.s32.totalorder %s14, 0
    %p123 = por %p121, %p122
    %p124 = scmp.ne.s32.totalorder %s116, %s118
    %p125 = scmp.eq.s32.totalorder %s19, 1
    %p126 = por %p124, %p125
    %p127 = scmp.ne.s32.totalorder %s118, %s119
    %p128 = scmp.eq.s32.totalorder %s19, 0
    %p129 = por %p127, %p128
    %p130 = scmp.ne.s32.totalorder %s118, %s119
    %p131 = scmp.eq.s32.totalorder %s20, 1
    %p132 = por %p130, %p131
    %p134 = scmp.ne.s32.totalorder %s119, %s133
    %p135 = scmp.eq.s32.totalorder %s20, 0
    %p136 = por %p134, %p135
    %s138 = sadd.s32 %s137, 1
    %p141 = scmp.eq.s32.totalorder %s14, 1
    %p142 = scmp.ne.s32.totalorder %s137, %s139
    %p143 = scmp.eq.s32.totalorder %s14, 0
    %p144 = por %p142, %p143
    %p145 = scmp.ne.s32.totalorder %s137, %s139
    %p146 = scmp.eq.s32.totalorder %s19, 1
    %p147 = por %p145, %p146
    %p148 = scmp.ne.s32.totalorder %s139, %s140
    %p149 = scmp.eq.s32.totalorder %s19, 0
    %p150 = por %p148, %p149
    %p151 = scmp.ne.s32.totalorder %s139, %s140
    %p152 = scmp.eq.s32.totalorder %s20, 1
    %p153 = por %p151, %p152
    %p155 = scmp.ne.s32.totalorder %s140, %s154
    %p156 = scmp.eq.s32.totalorder %s20, 0
    %p157 = por %p155, %p156
    %s158 = ssub.s32 %s14, %s21
    %p159 = scmp.eq.s32.totalorder %s158, 0
    %s161 = sadd.s32 %s160, 1
    %s162 = scalar_select %p159, %s160, %s161
    %p165 = pneg %p159
    %p166 = scmp.eq.s32.totalorder %s14, 1
    %p167 = por %p165, %p166
    %p168 = scmp.ne.s32.totalorder %s160, %s163
    %p169 = scmp.eq.s32.totalorder %s14, 0
    %p170 = por %p168, %p169
    %p171 = scmp.ne.s32.totalorder %s160, %s163
    %p172 = scmp.eq.s32.totalorder %s19, 1
    %p173 = por %p171, %p172
    %p174 = scmp.ne.s32.totalorder %s163, %s164
    %p175 = scmp.eq.s32.totalorder %s19, 0
    %p176 = por %p174, %p175
    %p177 = scmp.ne.s32.totalorder %s163, %s164
    %p178 = scmp.eq.s32.totalorder %s20, 1
    %p179 = por %p177, %p178
    %p181 = scmp.ne.s32.totalorder %s164, %s180
    %p182 = scmp.eq.s32.totalorder %s20, 0
    %p183 = por %p181, %p182
    %p184 = scmp.le.s32.totalorder 1, %s14
    %p185 = scmp.lt.s32.totalorder %s14, 3
    %p186 = pnand %p184, %p185
    %p187 = pneg %p186
    // Predicated region
    $region9: #{tpu_custom_call.1} parent=5 // pred_check
      _
    $region10: #{tpu_custom_call.1} parent=5 // pred_check_branch
      %189 = sbr.rel (%p186) target = $region12
    $region11: #{tpu_custom_call.1} parent=5 // pred_region
      %s190 = ssub.s32 %s14, 1
      // Predicated region
      $region13: #{tpu_custom_call.1} parent=11 // pred_check
        %p191 = pneg %p87
      $region14: #{tpu_custom_call.1} parent=11 // pred_check_branch
        %193 = sbr.rel (%p191) target = $region16
      $region15: #{tpu_custom_call.1} parent=11 // pred_region
        _
      $region16: #{tpu_custom_call.1} parent=11 // pred_fallthru
        _
      // Predicated region
      $region17: #{tpu_custom_call.1} parent=11 // pred_check
        %p194 = pneg %p108
      $region18: #{tpu_custom_call.1} parent=11 // pred_check_branch
        %196 = sbr.rel (%p194) target = $region20
      $region19: #{tpu_custom_call.1} parent=11 // pred_region
        _
      $region20: #{tpu_custom_call.1} parent=11 // pred_fallthru
        _
      // Predicated region
      $region21: #{tpu_custom_call.1} parent=11 // pred_check
        %p197 = pneg %p129
      $region22: #{tpu_custom_call.1} parent=11 // pred_check_branch
        %199 = sbr.rel (%p197) target = $region24
      $region23: #{tpu_custom_call.1} parent=11 // pred_region
        _
      $region24: #{tpu_custom_call.1} parent=11 // pred_fallthru
        _
      // Predicated region
      $region25: #{tpu_custom_call.1} parent=11 // pred_check
        %p200 = pneg %p150
      $region26: #{tpu_custom_call.1} parent=11 // pred_check_branch
        %202 = sbr.rel (%p200) target = $region28
      $region27: #{tpu_custom_call.1} parent=11 // pred_region
        _
      $region28: #{tpu_custom_call.1} parent=11 // pred_fallthru
        _
    $region12: #{tpu_custom_call.1} parent=5 // pred_fallthru
      _
    %p203 = scmp.lt.s32.totalorder %s14, 2
    // Predicated region
    $region29: #{tpu_custom_call.1} parent=5 // pred_check
      %p204 = pneg %p203
    $region30: #{tpu_custom_call.1} parent=5 // pred_check_branch
      %206 = sbr.rel (%p204) target = $region32
    $region31: #{tpu_custom_call.1} parent=5 // pred_region
      // Predicated region
      $region33: #{tpu_custom_call.1} parent=31 // pred_check
        %p207 = pneg %p34
      $region34: #{tpu_custom_call.1} parent=31 // pred_check_branch
        %209 = sbr.rel (%p207) target = $region36
      $region35: #{tpu_custom_call.1} parent=31 // pred_region
        %s210 = smul.u32 32, %s14
        %p211 = scmp.lt.s32.totalorder %s210, 63
        %s212 = scalar_select %p211, %s210, 63
        %s213 = smul.addr %s212, 8
        %s214 = scalar_lea.vmem %s0, %s213
        %s215 = smul.u32 32, %s14
      $region36: #{tpu_custom_call.1} parent=31 // pred_fallthru
        _
      // Predicated region
      $region37: #{tpu_custom_call.1} parent=31 // pred_check
        %p216 = pneg %p60
      $region38: #{tpu_custom_call.1} parent=31 // pred_check_branch
        %218 = sbr.rel (%p216) target = $region40
      $region39: #{tpu_custom_call.1} parent=31 // pred_region
        %s219 = smul.u32 32, %s14
        %p220 = scmp.lt.s32.totalorder %s219, 63
        %s221 = scalar_select %p220, %s219, 63
        %s222 = smul.addr %s221, 8
        %s223 = scalar_lea.vmem %s1, %s222
        %s224 = smul.u32 32, %s14
      $region40: #{tpu_custom_call.1} parent=31 // pred_fallthru
        _
    $region32: #{tpu_custom_call.1} parent=5 // pred_fallthru
      _
    %p225 = scmp.le.s32.totalorder 1, %s14
    %p226 = scmp.lt.s32.totalorder %s14, 3
    %p227 = pnand %p225, %p226
    %p228 = pneg %p227
    // Predicated region
    $region41: #{tpu_custom_call.1} parent=5 // pred_check
      _
    $region42: #{tpu_custom_call.1} parent=5 // pred_check_branch
      %230 = sbr.rel (%p227) target = $region44
    $region43: #{tpu_custom_call.1} parent=5 // pred_region
      %s231 = ssub.s32 %s14, 1
      %s232 = smul.u32 32, %s19
      %p233 = scmp.lt.s32.totalorder %s232, 63
      %s234 = scalar_select %p233, %s232, 63
      %s235 = smul.addr %s234, 8
      %s236 = scalar_lea.vmem %s0, %s235
      %p237 = pneg %p40
      %p238 = pneg %p37
      %s239 = smul.u32 32, %s19
      %p240 = scmp.lt.s32.totalorder %s239, 63
      %s241 = scalar_select %p240, %s239, 63
      %s242 = smul.addr %s241, 8
      %s243 = scalar_lea.vmem %s1, %s242
      %p244 = pneg %p66
      %p245 = pneg %p63
      %p246 = pneg %p87
      %p247 = pneg %p84
      %p248 = pneg %p108
      %p249 = pneg %p105
      %p250 = pneg %p129
      %p251 = pneg %p126
      %p252 = pneg %p150
      %p253 = pneg %p147
      %p254 = pneg %p176
      %p255 = pneg %p173
      %s256 = smul.u32 32, %s19
      %p257 = scmp.lt.s32.totalorder %s256, 63
      %s258 = scalar_select %p257, %s256, 63
      %s259 = smul.addr %s258, 8
      %s260 = scalar_lea.vmem %s6, %s259
      %s261 = smul.u32 32, %s19
      %p262 = scmp.lt.s32.totalorder %s261, 63
      %s263 = scalar_select %p262, %s261, 63
      %s264 = smul.addr %s263, 8
      %s265 = scalar_lea.vmem %s0, %s264
      %s266 = smul.u32 32, %s19
      %s267 = smul.u32 32, %s19
      %p268 = scmp.lt.s32.totalorder %s267, 63
      %s269 = scalar_select %p268, %s267, 63
      %s270 = smul.addr %s269, 8
      %s271 = scalar_lea.vmem %s1, %s270
      %s272 = smul.u32 32, %s19
      %s273 = smul.u32 32, %s19
      %p274 = scmp.lt.s32.totalorder %s273, 63
      %s275 = scalar_select %p274, %s273, 63
      %s276 = smul.addr %s275, 8
      %s277 = scalar_lea.vmem %s6, %s276
      %s278 = smul.u32 32, %s19
      %v279 = vld [vmem:[%s265] sm:$0xff]
      %v280 = vld [vmem:[%s265 + $0x8] sm:$0xff]
      %v281 = vld [vmem:[%s265 + $0x10] sm:$0xff]
      %v282 = vld [vmem:[%s265 + $0x18] sm:$0xff]
      %v283 = vld [vmem:[%s265 + $0x20] sm:$0xff]
      %v284 = vld [vmem:[%s265 + $0x28] sm:$0xff]
      %v285 = vld [vmem:[%s265 + $0x30] sm:$0xff]
      %v286 = vld [vmem:[%s265 + $0x38] sm:$0xff]
      %v287 = vld [vmem:[%s265 + $0x40] sm:$0xff]
      %v288 = vld [vmem:[%s265 + $0x48] sm:$0xff]
      %v289 = vld [vmem:[%s265 + $0x50] sm:$0xff]
      %v290 = vld [vmem:[%s265 + $0x58] sm:$0xff]
      %v291 = vld [vmem:[%s265 + $0x60] sm:$0xff]
      %v292 = vld [vmem:[%s265 + $0x68] sm:$0xff]
      %v293 = vld [vmem:[%s265 + $0x70] sm:$0xff]
      %v294 = vld [vmem:[%s265 + $0x78] sm:$0xff]
      %v295 = vld [vmem:[%s265 + $0x80] sm:$0xff]
      %v296 = vld [vmem:[%s265 + $0x88] sm:$0xff]
      %v297 = vld [vmem:[%s265 + $0x90] sm:$0xff]
      %v298 = vld [vmem:[%s265 + $0x98] sm:$0xff]
      %v299 = vld [vmem:[%s265 + $0xa0] sm:$0xff]
      %v300 = vld [vmem:[%s265 + $0xa8] sm:$0xff]
      %v301 = vld [vmem:[%s265 + $0xb0] sm:$0xff]
      %v302 = vld [vmem:[%s265 + $0xb8] sm:$0xff]
      %v303 = vld [vmem:[%s265 + $0xc0] sm:$0xff]
      %v304 = vld [vmem:[%s265 + $0xc8] sm:$0xff]
      %v305 = vld [vmem:[%s265 + $0xd0] sm:$0xff]
      %v306 = vld [vmem:[%s265 + $0xd8] sm:$0xff]
      %v307 = vld [vmem:[%s265 + $0xe0] sm:$0xff]
      %v308 = vld [vmem:[%s265 + $0xe8] sm:$0xff]
      %v309 = vld [vmem:[%s265 + $0xf0] sm:$0xff]
      %v310 = vld [vmem:[%s265 + $0xf8] sm:$0xff]
      %v311 = vld [vmem:[%s271] sm:$0xff]
      %v312 = vld [vmem:[%s271 + $0x8] sm:$0xff]
      %v313 = vld [vmem:[%s271 + $0x10] sm:$0xff]
      %v314 = vld [vmem:[%s271 + $0x18] sm:$0xff]
      %v315 = vld [vmem:[%s271 + $0x20] sm:$0xff]
      %v316 = vld [vmem:[%s271 + $0x28] sm:$0xff]
      %v317 = vld [vmem:[%s271 + $0x30] sm:$0xff]
      %v318 = vld [vmem:[%s271 + $0x38] sm:$0xff]
      %v319 = vld [vmem:[%s271 + $0x40] sm:$0xff]
      %v320 = vld [vmem:[%s271 + $0x48] sm:$0xff]
      %v321 = vld [vmem:[%s271 + $0x50] sm:$0xff]
      %v322 = vld [vmem:[%s271 + $0x58] sm:$0xff]
      %v323 = vld [vmem:[%s271 + $0x60] sm:$0xff]
      %v324 = vld [vmem:[%s271 + $0x68] sm:$0xff]
      %v325 = vld [vmem:[%s271 + $0x70] sm:$0xff]
      %v326 = vld [vmem:[%s271 + $0x78] sm:$0xff]
      %v327 = vld [vmem:[%s271 + $0x80] sm:$0xff]
      %v328 = vld [vmem:[%s271 + $0x88] sm:$0xff]
      %v329 = vld [vmem:[%s271 + $0x90] sm:$0xff]
      %v330 = vld [vmem:[%s271 + $0x98] sm:$0xff]
      %v331 = vld [vmem:[%s271 + $0xa0] sm:$0xff]
      %v332 = vld [vmem:[%s271 + $0xa8] sm:$0xff]
      %v333 = vld [vmem:[%s271 + $0xb0] sm:$0xff]
      %v334 = vld [vmem:[%s271 + $0xb8] sm:$0xff]
      %v335 = vld [vmem:[%s271 + $0xc0] sm:$0xff]
      %v336 = vld [vmem:[%s271 + $0xc8] sm:$0xff]
      %v337 = vld [vmem:[%s271 + $0xd0] sm:$0xff]
      %v338 = vld [vmem:[%s271 + $0xd8] sm:$0xff]
      %v339 = vld [vmem:[%s271 + $0xe0] sm:$0xff]
      %v340 = vld [vmem:[%s271 + $0xe8] sm:$0xff]
      %v341 = vld [vmem:[%s271 + $0xf0] sm:$0xff]
      %v342 = vld [vmem:[%s271 + $0xf8] sm:$0xff]
      %v343 = vmul.f32 %v279, %v311
      %v344 = vmul.f32 %v280, %v312
      %v345 = vmul.f32 %v281, %v313
      %v346 = vmul.f32 %v282, %v314
      %v347 = vmul.f32 %v283, %v315
      %v348 = vmul.f32 %v284, %v316
      %v349 = vmul.f32 %v285, %v317
      %v350 = vmul.f32 %v286, %v318
      %v351 = vmul.f32 %v287, %v319
      %v352 = vmul.f32 %v288, %v320
      %v353 = vmul.f32 %v289, %v321
      %v354 = vmul.f32 %v290, %v322
      %v355 = vmul.f32 %v291, %v323
      %v356 = vmul.f32 %v292, %v324
      %v357 = vmul.f32 %v293, %v325
      %v358 = vmul.f32 %v294, %v326
      %v359 = vmul.f32 %v295, %v327
      %v360 = vmul.f32 %v296, %v328
      %v361 = vmul.f32 %v297, %v329
      %v362 = vmul.f32 %v298, %v330
      %v363 = vmul.f32 %v299, %v331
      %v364 = vmul.f32 %v300, %v332
      %v365 = vmul.f32 %v301, %v333
      %v366 = vmul.f32 %v302, %v334
      %v367 = vmul.f32 %v303, %v335
      %v368 = vmul.f32 %v304, %v336
      %v369 = vmul.f32 %v305, %v337
      %v370 = vmul.f32 %v306, %v338
      %v371 = vmul.f32 %v307, %v339
      %v372 = vmul.f32 %v308, %v340
      %v373 = vmul.f32 %v309, %v341
      %v374 = vmul.f32 %v310, %v342
      %v375 = vld [vmem:[%s2] sm:$0xff]
      %v376 = vld [vmem:[%s2 + $0x8] sm:$0xff]
      %v377 = vld [vmem:[%s2 + $0x10] sm:$0xff]
      %v378 = vld [vmem:[%s2 + $0x18] sm:$0xff]
      %v379 = vld [vmem:[%s3] sm:$0x1]
      %v381 = vlaneseq
      %v382 = vshrl.u32 %v381, 7
      %v383 = vsub.s32 0, %v382
      %v384 = vrot.slane %v379, %v383
      %vm386 = vcmask 261120
      %v388 = vsel %vm386, %v343, 0
      %v391 = vsel %vm386, %v344, 0
      %v394 = vsel %vm386, %v345, 0
      %v397 = vsel %vm386, %v346, 0
      %v400 = vsel %vm386, %v347, 0
      %v403 = vsel %vm386, %v348, 0
      %v406 = vsel %vm386, %v349, 0
      %v409 = vsel %vm386, %v350, 0
      %v412 = vsel %vm386, %v351, 0
      %v415 = vsel %vm386, %v352, 0
      %v418 = vsel %vm386, %v353, 0
      %v421 = vsel %vm386, %v354, 0
      %v424 = vsel %vm386, %v355, 0
      %v427 = vsel %vm386, %v356, 0
      %v430 = vsel %vm386, %v357, 0
      %v433 = vsel %vm386, %v358, 0
      %v436 = vsel %vm386, %v359, 0
      %v439 = vsel %vm386, %v360, 0
      %v442 = vsel %vm386, %v361, 0
      %v445 = vsel %vm386, %v362, 0
      %v448 = vsel %vm386, %v363, 0
      %v451 = vsel %vm386, %v364, 0
      %v454 = vsel %vm386, %v365, 0
      %v457 = vsel %vm386, %v366, 0
      %v460 = vsel %vm386, %v367, 0
      %v463 = vsel %vm386, %v368, 0
      %v466 = vsel %vm386, %v369, 0
      %v469 = vsel %vm386, %v370, 0
      %v472 = vsel %vm386, %v371, 0
      %v475 = vsel %vm386, %v372, 0
      %v478 = vsel %vm386, %v373, 0
      %v481 = vsel %vm386, %v374, 0
      %483 = vmatprep.subr.mxu0 0.0
      %484 = vmatpush1.msra.mxu0 %v375
      %485 = vmatprep.subr.mxu0 0.0
      %486 = vmatpush1.msra.mxu0 %v376
      %487 = vmatprep.subr.mxu0 0.0
      %488 = vmatpush1.msra.mxu0 %v377
      %489 = vmatprep.subr.mxu0 0.0
      %490 = vmatpush1.msra.mxu0 %v378
      %491 = vmatprep.subr.mxu0 0.0
      %492 = vmatpush1.msra.mxu0 0.0
      %493 = vmatprep.subr.mxu0 0.0
      %494 = vmatpush1.msra.mxu0 0.0
      %495 = vmatprep.subr.mxu0 0.0
      %496 = vmatpush1.msra.mxu0 0.0
      %497 = vmatprep.subr.mxu0 0.0
      %498 = vmatpush1.msra.mxu0 0.0
      %499 = vmatprep.subr.mxu0 0.0
      %500 = vmatpush1.msra.mxu0 0.0
      %501 = vmatprep.subr.mxu0 0.0
      %502 = vmatpush1.msra.mxu0 0.0
      %503 = vmatprep.subr.mxu0 0.0
      %504 = vmatpush1.msra.mxu0 0.0
      %505 = vmatprep.subr.mxu0 0.0
      %506 = vmatpush1.msra.mxu0 0.0
      %507 = vmatprep.subr.mxu0 0.0
      %508 = vmatpush1.msra.mxu0 0.0
      %509 = vmatprep.subr.mxu0 0.0
      %510 = vmatpush1.msra.mxu0 0.0
      %511 = vmatprep.subr.mxu0 0.0
      %512 = vmatpush1.msra.mxu0 0.0
      %513 = vmatprep.subr.mxu0 0.0
      %514 = vmatpush1.msra.mxu0 0.0
      %515 = vmatprep.subr.mxu0 0.0
      %516 = vmatpush1.msra.mxu0 0.0
      %517 = vmatprep.subr.mxu0 0.0
      %518 = vmatpush1.msra.mxu0 0.0
      %519 = vmatprep.subr.mxu0 0.0
      %520 = vmatpush1.msra.mxu0 0.0
      %521 = vmatprep.subr.mxu0 0.0
      %522 = vmatpush1.msra.mxu0 0.0
      %523 = vmatprep.subr.mxu0 0.0
      %524 = vmatpush1.msra.mxu0 0.0
      %525 = vmatprep.subr.mxu0 0.0
      %526 = vmatpush1.msra.mxu0 0.0
      %527 = vmatprep.subr.mxu0 0.0
      %528 = vmatpush1.msra.mxu0 0.0
      %529 = vmatprep.subr.mxu0 0.0
      %530 = vmatpush1.msra.mxu0 0.0
      %531 = vmatprep.subr.mxu0 0.0
      %532 = vmatpush1.msra.mxu0 0.0
      %533 = vmatprep.subr.mxu0 0.0
      %534 = vmatpush1.msra.mxu0 0.0
      %535 = vmatprep.subr.mxu0 0.0
      %536 = vmatpush1.msra.mxu0 0.0
      %537 = vmatprep.subr.mxu0 0.0
      %538 = vmatpush1.msra.mxu0 0.0
      %539 = vmatprep.subr.mxu0 0.0
      %540 = vmatpush1.msra.mxu0 0.0
      %541 = vmatprep.subr.mxu0 0.0
      %542 = vmatpush1.msra.mxu0 0.0
      %543 = vmatprep.subr.mxu0 0.0
      %544 = vmatpush1.msra.mxu0 0.0
      %545 = vmatprep.subr.mxu0 0.0
      %546 = vmatpush1.msra.mxu0 0.0
      %547 = vmatprep.mubr.f32.mxu0 0.0
      %548 = vmatmul.mubr.f32.gmra.mrb[0].mxu0 %v388
      %v549 = vpop.f32.mrb[0].mxu0
      %v550 = vadd.f32 %v384, %v549
      %v551 = vpop.f32.mrb[0].mxu0
      %552 = vmatprep.mubr.f32.mxu0 0.0
      %553 = vmatmul.mubr.f32.gmra.mrb[0].mxu0 %v391
      %v554 = vpop.f32.mrb[0].mxu0
      %v555 = vadd.f32 %v384, %v554
      %v556 = vpop.f32.mrb[0].mxu0
      %557 = vmatprep.mubr.f32.mxu0 0.0
      %558 = vmatmul.mubr.f32.gmra.mrb[0].mxu0 %v394
      %v559 = vpop.f32.mrb[0].mxu0
      %v560 = vadd.f32 %v384, %v559
      %v561 = vpop.f32.mrb[0].mxu0
      %562 = vmatprep.mubr.f32.mxu0 0.0
      %563 = vmatmul.mubr.f32.gmra.mrb[0].mxu0 %v397
      %v564 = vpop.f32.mrb[0].mxu0
      %v565 = vadd.f32 %v384, %v564
      %v566 = vpop.f32.mrb[0].mxu0
      %567 = vmatprep.mubr.f32.mxu0 0.0
      %568 = vmatmul.mubr.f32.gmra.mrb[0].mxu0 %v400
      %v569 = vpop.f32.mrb[0].mxu0
      %v570 = vadd.f32 %v384, %v569
      %v571 = vpop.f32.mrb[0].mxu0
      %572 = vmatprep.mubr.f32.mxu0 0.0
      %573 = vmatmul.mubr.f32.gmra.mrb[0].mxu0 %v403
      %v574 = vpop.f32.mrb[0].mxu0
      %v575 = vadd.f32 %v384, %v574
      %v576 = vpop.f32.mrb[0].mxu0
      %577 = vmatprep.mubr.f32.mxu0 0.0
      %578 = vmatmul.mubr.f32.gmra.mrb[0].mxu0 %v406
      %v579 = vpop.f32.mrb[0].mxu0
      %v580 = vadd.f32 %v384, %v579
      %v581 = vpop.f32.mrb[0].mxu0
      %582 = vmatprep.mubr.f32.mxu0 0.0
      %583 = vmatmul.mubr.f32.gmra.mrb[0].mxu0 %v409
      %v584 = vpop.f32.mrb[0].mxu0
      %v585 = vadd.f32 %v384, %v584
      %v586 = vpop.f32.mrb[0].mxu0
      %587 = vmatprep.mubr.f32.mxu0 0.0
      %588 = vmatmul.mubr.f32.gmra.mrb[0].mxu0 %v412
      %v589 = vpop.f32.mrb[0].mxu0
      %v590 = vadd.f32 %v384, %v589
      %v591 = vpop.f32.mrb[0].mxu0
      %592 = vmatprep.mubr.f32.mxu0 0.0
      %593 = vmatmul.mubr.f32.gmra.mrb[0].mxu0 %v415
      %v594 = vpop.f32.mrb[0].mxu0
      %v595 = vadd.f32 %v384, %v594
      %v596 = vpop.f32.mrb[0].mxu0
      %597 = vmatprep.mubr.f32.mxu0 0.0
      %598 = vmatmul.mubr.f32.gmra.mrb[0].mxu0 %v418
      %v599 = vpop.f32.mrb[0].mxu0
      %v600 = vadd.f32 %v384, %v599
      %v601 = vpop.f32.mrb[0].mxu0
      %602 = vmatprep.mubr.f32.mxu0 0.0
      %603 = vmatmul.mubr.f32.gmra.mrb[0].mxu0 %v421
      %v604 = vpop.f32.mrb[0].mxu0
      %v605 = vadd.f32 %v384, %v604
      %v606 = vpop.f32.mrb[0].mxu0
      %607 = vmatprep.mubr.f32.mxu0 0.0
      %608 = vmatmul.mubr.f32.gmra.mrb[0].mxu0 %v424
      %v609 = vpop.f32.mrb[0].mxu0
      %v610 = vadd.f32 %v384, %v609
      %v611 = vpop.f32.mrb[0].mxu0
      %612 = vmatprep.mubr.f32.mxu0 0.0
      %613 = vmatmul.mubr.f32.gmra.mrb[0].mxu0 %v427
      %v614 = vpop.f32.mrb[0].mxu0
      %v615 = vadd.f32 %v384, %v614
      %v616 = vpop.f32.mrb[0].mxu0
      %617 = vmatprep.mubr.f32.mxu0 0.0
      %618 = vmatmul.mubr.f32.gmra.mrb[0].mxu0 %v430
      %v619 = vpop.f32.mrb[0].mxu0
      %v620 = vadd.f32 %v384, %v619
      %v621 = vpop.f32.mrb[0].mxu0
      %622 = vmatprep.mubr.f32.mxu0 0.0
      %623 = vmatmul.mubr.f32.gmra.mrb[0].mxu0 %v433
      %v624 = vpop.f32.mrb[0].mxu0
      %v625 = vadd.f32 %v384, %v624
      %v626 = vpop.f32.mrb[0].mxu0
      %627 = vmatprep.mubr.f32.mxu0 0.0
      %628 = vmatmul.mubr.f32.gmra.mrb[0].mxu0 %v436
      %v629 = vpop.f32.mrb[0].mxu0
      %v630 = vadd.f32 %v384, %v629
      %v631 = vpop.f32.mrb[0].mxu0
      %632 = vmatprep.mubr.f32.mxu0 0.0
      %633 = vmatmul.mubr.f32.gmra.mrb[0].mxu0 %v439
      %v634 = vpop.f32.mrb[0].mxu0
      %v635 = vadd.f32 %v384, %v634
      %v636 = vpop.f32.mrb[0].mxu0
      %637 = vmatprep.mubr.f32.mxu0 0.0
      %638 = vmatmul.mubr.f32.gmra.mrb[0].mxu0 %v442
      %v639 = vpop.f32.mrb[0].mxu0
      %v640 = vadd.f32 %v384, %v639
      %v641 = vpop.f32.mrb[0].mxu0
      %642 = vmatprep.mubr.f32.mxu0 0.0
      %643 = vmatmul.mubr.f32.gmra.mrb[0].mxu0 %v445
      %v644 = vpop.f32.mrb[0].mxu0
      %v645 = vadd.f32 %v384, %v644
      %v646 = vpop.f32.mrb[0].mxu0
      %647 = vmatprep.mubr.f32.mxu0 0.0
      %648 = vmatmul.mubr.f32.gmra.mrb[0].mxu0 %v448
      %v649 = vpop.f32.mrb[0].mxu0
      %v650 = vadd.f32 %v384, %v649
      %v651 = vpop.f32.mrb[0].mxu0
      %652 = vmatprep.mubr.f32.mxu0 0.0
      %653 = vmatmul.mubr.f32.gmra.mrb[0].mxu0 %v451
      %v654 = vpop.f32.mrb[0].mxu0
      %v655 = vadd.f32 %v384, %v654
      %v656 = vpop.f32.mrb[0].mxu0
      %657 = vmatprep.mubr.f32.mxu0 0.0
      %658 = vmatmul.mubr.f32.gmra.mrb[0].mxu0 %v454
      %v659 = vpop.f32.mrb[0].mxu0
      %v660 = vadd.f32 %v384, %v659
      %v661 = vpop.f32.mrb[0].mxu0
      %662 = vmatprep.mubr.f32.mxu0 0.0
      %663 = vmatmul.mubr.f32.gmra.mrb[0].mxu0 %v457
      %v664 = vpop.f32.mrb[0].mxu0
      %v665 = vadd.f32 %v384, %v664
      %v666 = vpop.f32.mrb[0].mxu0
      %667 = vmatprep.mubr.f32.mxu0 0.0
      %668 = vmatmul.mubr.f32.gmra.mrb[0].mxu0 %v460
      %v669 = vpop.f32.mrb[0].mxu0
      %v670 = vadd.f32 %v384, %v669
      %v671 = vpop.f32.mrb[0].mxu0
      %672 = vmatprep.mubr.f32.mxu0 0.0
      %673 = vmatmul.mubr.f32.gmra.mrb[0].mxu0 %v463
      %v674 = vpop.f32.mrb[0].mxu0
      %v675 = vadd.f32 %v384, %v674
      %v676 = vpop.f32.mrb[0].mxu0
      %677 = vmatprep.mubr.f32.mxu0 0.0
      %678 = vmatmul.mubr.f32.gmra.mrb[0].mxu0 %v466
      %v679 = vpop.f32.mrb[0].mxu0
      %v680 = vadd.f32 %v384, %v679
      %v681 = vpop.f32.mrb[0].mxu0
      %682 = vmatprep.mubr.f32.mxu0 0.0
      %683 = vmatmul.mubr.f32.gmra.mrb[0].mxu0 %v469
      %v684 = vpop.f32.mrb[0].mxu0
      %v685 = vadd.f32 %v384, %v684
      %v686 = vpop.f32.mrb[0].mxu0
      %687 = vmatprep.mubr.f32.mxu0 0.0
      %688 = vmatmul.mubr.f32.gmra.mrb[0].mxu0 %v472
      %v689 = vpop.f32.mrb[0].mxu0
      %v690 = vadd.f32 %v384, %v689
      %v691 = vpop.f32.mrb[0].mxu0
      %692 = vmatprep.mubr.f32.mxu0 0.0
      %693 = vmatmul.mubr.f32.gmra.mrb[0].mxu0 %v475
      %v694 = vpop.f32.mrb[0].mxu0
      %v695 = vadd.f32 %v384, %v694
      %v696 = vpop.f32.mrb[0].mxu0
      %697 = vmatprep.mubr.f32.mxu0 0.0
      %698 = vmatmul.mubr.f32.gmra.mrb[0].mxu0 %v478
      %v699 = vpop.f32.mrb[0].mxu0
      %v700 = vadd.f32 %v384, %v699
      %v701 = vpop.f32.mrb[0].mxu0
      %702 = vmatprep.mubr.f32.mxu0 0.0
      %703 = vmatmul.mubr.f32.gmra.mrb[0].mxu0 %v481
      %v704 = vpop.f32.mrb[0].mxu0
      %v705 = vadd.f32 %v384, %v704
      %v706 = vpop.f32.mrb[0].mxu0
      %707 = vdwg.mxu0
      %v708 = vmax.f32 %v550, 0.0
      %v709 = vmax.f32 %v555, 0.0
      %v710 = vmax.f32 %v560, 0.0
      %v711 = vmax.f32 %v565, 0.0
      %v712 = vmax.f32 %v570, 0.0
      %v713 = vmax.f32 %v575, 0.0
      %v714 = vmax.f32 %v580, 0.0
      %v715 = vmax.f32 %v585, 0.0
      %v716 = vmax.f32 %v590, 0.0
      %v717 = vmax.f32 %v595, 0.0
      %v718 = vmax.f32 %v600, 0.0
      %v719 = vmax.f32 %v605, 0.0
      %v720 = vmax.f32 %v610, 0.0
      %v721 = vmax.f32 %v615, 0.0
      %v722 = vmax.f32 %v620, 0.0
      %v723 = vmax.f32 %v625, 0.0
      %v724 = vmax.f32 %v630, 0.0
      %v725 = vmax.f32 %v635, 0.0
      %v726 = vmax.f32 %v640, 0.0
      %v727 = vmax.f32 %v645, 0.0
      %v728 = vmax.f32 %v650, 0.0
      %v729 = vmax.f32 %v655, 0.0
      %v730 = vmax.f32 %v660, 0.0
      %v731 = vmax.f32 %v665, 0.0
      %v732 = vmax.f32 %v670, 0.0
      %v733 = vmax.f32 %v675, 0.0
      %v734 = vmax.f32 %v680, 0.0
      %v735 = vmax.f32 %v685, 0.0
      %v736 = vmax.f32 %v690, 0.0
      %v737 = vmax.f32 %v695, 0.0
      %v738 = vmax.f32 %v700, 0.0
      %v739 = vmax.f32 %v705, 0.0
      %v740 = vld [vmem:[%s4] sm:$0xff]
      %v741 = vld [vmem:[%s4 + $0x8] sm:$0xff]
      %v742 = vld [vmem:[%s4 + $0x10] sm:$0xff]
      %v743 = vld [vmem:[%s4 + $0x18] sm:$0xff]
      %v744 = vld [vmem:[#allocation2] sm:$0x1]
      %v746 = vlaneseq
      %v747 = vshrl.u32 %v746, 7
      %v748 = vsub.s32 0, %v747
      %v749 = vrot.slane %v744, %v748
      %v752 = vsel %vm386, %v708, 0
      %v755 = vsel %vm386, %v709, 0
      %v758 = vsel %vm386, %v710, 0
      %v761 = vsel %vm386, %v711, 0
      %v764 = vsel %vm386, %v712, 0
      %v767 = vsel %vm386, %v713, 0
      %v770 = vsel %vm386, %v714, 0
      %v773 = vsel %vm386, %v715, 0
      %v776 = vsel %vm386, %v716, 0
      %v779 = vsel %vm386, %v717, 0
      %v782 = vsel %vm386, %v718, 0
      %v785 = vsel %vm386, %v719, 0
      %v788 = vsel %vm386, %v720, 0
      %v791 = vsel %vm386, %v721, 0
      %v794 = vsel %vm386, %v722, 0
      %v797 = vsel %vm386, %v723, 0
      %v800 = vsel %vm386, %v724, 0
      %v803 = vsel %vm386, %v725, 0
      %v806 = vsel %vm386, %v726, 0
      %v809 = vsel %vm386, %v727, 0
      %v812 = vsel %vm386, %v728, 0
      %v815 = vsel %vm386, %v729, 0
      %v818 = vsel %vm386, %v730, 0
      %v821 = vsel %vm386, %v731, 0
      %v824 = vsel %vm386, %v732, 0
      %v827 = vsel %vm386, %v733, 0
      %v830 = vsel %vm386, %v734, 0
      %v833 = vsel %vm386, %v735, 0
      %v836 = vsel %vm386, %v736, 0
      %v839 = vsel %vm386, %v737, 0
      %v842 = vsel %vm386, %v738, 0
      %v845 = vsel %vm386, %v739, 0
      %847 = vmatprep.subr.mxu0 0.0
      %848 = vmatpush1.msra.mxu0 %v740
      %849 = vmatprep.subr.mxu0 0.0
      %850 = vmatpush1.msra.mxu0 %v741
      %851 = vmatprep.subr.mxu0 0.0
      %852 = vmatpush1.msra.mxu0 %v742
      %853 = vmatprep.subr.mxu0 0.0
      %854 = vmatpush1.msra.mxu0 %v743
      %855 = vmatprep.subr.mxu0 0.0
      %856 = vmatpush1.msra.mxu0 0.0
      %857 = vmatprep.subr.mxu0 0.0
      %858 = vmatpush1.msra.mxu0 0.0
      %859 = vmatprep.subr.mxu0 0.0
      %860 = vmatpush1.msra.mxu0 0.0
      %861 = vmatprep.subr.mxu0 0.0
      %862 = vmatpush1.msra.mxu0 0.0
      %863 = vmatprep.subr.mxu0 0.0
      %864 = vmatpush1.msra.mxu0 0.0
      %865 = vmatprep.subr.mxu0 0.0
      %866 = vmatpush1.msra.mxu0 0.0
      %867 = vmatprep.subr.mxu0 0.0
      %868 = vmatpush1.msra.mxu0 0.0
      %869 = vmatprep.subr.mxu0 0.0
      %870 = vmatpush1.msra.mxu0 0.0
      %871 = vmatprep.subr.mxu0 0.0
      %872 = vmatpush1.msra.mxu0 0.0
      %873 = vmatprep.subr.mxu0 0.0
      %874 = vmatpush1.msra.mxu0 0.0
      %875 = vmatprep.subr.mxu0 0.0
      %876 = vmatpush1.msra.mxu0 0.0
      %877 = vmatprep.subr.mxu0 0.0
      %878 = vmatpush1.msra.mxu0 0.0
      %879 = vmatprep.subr.mxu0 0.0
      %880 = vmatpush1.msra.mxu0 0.0
      %881 = vmatprep.subr.mxu0 0.0
      %882 = vmatpush1.msra.mxu0 0.0
      %883 = vmatprep.subr.mxu0 0.0
      %884 = vmatpush1.msra.mxu0 0.0
      %885 = vmatprep.subr.mxu0 0.0
      %886 = vmatpush1.msra.mxu0 0.0
      %887 = vmatprep.subr.mxu0 0.0
      %888 = vmatpush1.msra.mxu0 0.0
      %889 = vmatprep.subr.mxu0 0.0
      %890 = vmatpush1.msra.mxu0 0.0
      %891 = vmatprep.subr.mxu0 0.0
      %892 = vmatpush1.msra.mxu0 0.0
      %893 = vmatprep.subr.mxu0 0.0
      %894 = vmatpush1.msra.mxu0 0.0
      %895 = vmatprep.subr.mxu0 0.0
      %896 = vmatpush1.msra.mxu0 0.0
      %897 = vmatprep.subr.mxu0 0.0
      %898 = vmatpush1.msra.mxu0 0.0
      %899 = vmatprep.subr.mxu0 0.0
      %900 = vmatpush1.msra.mxu0 0.0
      %901 = vmatprep.subr.mxu0 0.0
      %902 = vmatpush1.msra.mxu0 0.0
      %903 = vmatprep.subr.mxu0 0.0
      %904 = vmatpush1.msra.mxu0 0.0
      %905 = vmatprep.subr.mxu0 0.0
      %906 = vmatpush1.msra.mxu0 0.0
      %907 = vmatprep.subr.mxu0 0.0
      %908 = vmatpush1.msra.mxu0 0.0
      %909 = vmatprep.subr.mxu0 0.0
      %910 = vmatpush1.msra.mxu0 0.0
      %911 = vmatprep.mubr.f32.mxu0 0.0
      %912 = vmatmul.mubr.f32.gmra.mrb[0].mxu0 %v752
      %v913 = vpop.f32.mrb[0].mxu0
      %v914 = vadd.f32 %v749, %v913
      %v915 = vpop.f32.mrb[0].mxu0
      %916 = vmatprep.mubr.f32.mxu0 0.0
      %917 = vmatmul.mubr.f32.gmra.mrb[0].mxu0 %v755
      %v918 = vpop.f32.mrb[0].mxu0
      %v919 = vadd.f32 %v749, %v918
      %v920 = vpop.f32.mrb[0].mxu0
      %921 = vmatprep.mubr.f32.mxu0 0.0
      %922 = vmatmul.mubr.f32.gmra.mrb[0].mxu0 %v758
      %v923 = vpop.f32.mrb[0].mxu0
      %v924 = vadd.f32 %v749, %v923
      %v925 = vpop.f32.mrb[0].mxu0
      %926 = vmatprep.mubr.f32.mxu0 0.0
      %927 = vmatmul.mubr.f32.gmra.mrb[0].mxu0 %v761
      %v928 = vpop.f32.mrb[0].mxu0
      %v929 = vadd.f32 %v749, %v928
      %v930 = vpop.f32.mrb[0].mxu0
      %931 = vmatprep.mubr.f32.mxu0 0.0
      %932 = vmatmul.mubr.f32.gmra.mrb[0].mxu0 %v764
      %v933 = vpop.f32.mrb[0].mxu0
      %v934 = vadd.f32 %v749, %v933
      %v935 = vpop.f32.mrb[0].mxu0
      %936 = vmatprep.mubr.f32.mxu0 0.0
      %937 = vmatmul.mubr.f32.gmra.mrb[0].mxu0 %v767
      %v938 = vpop.f32.mrb[0].mxu0
      %v939 = vadd.f32 %v749, %v938
      %v940 = vpop.f32.mrb[0].mxu0
      %941 = vmatprep.mubr.f32.mxu0 0.0
      %942 = vmatmul.mubr.f32.gmra.mrb[0].mxu0 %v770
      %v943 = vpop.f32.mrb[0].mxu0
      %v944 = vadd.f32 %v749, %v943
      %v945 = vpop.f32.mrb[0].mxu0
      %946 = vmatprep.mubr.f32.mxu0 0.0
      %947 = vmatmul.mubr.f32.gmra.mrb[0].mxu0 %v773
      %v948 = vpop.f32.mrb[0].mxu0
      %v949 = vadd.f32 %v749, %v948
      %v950 = vpop.f32.mrb[0].mxu0
      %951 = vmatprep.mubr.f32.mxu0 0.0
      %952 = vmatmul.mubr.f32.gmra.mrb[0].mxu0 %v776
      %v953 = vpop.f32.mrb[0].mxu0
      %v954 = vadd.f32 %v749, %v953
      %v955 = vpop.f32.mrb[0].mxu0
      %956 = vmatprep.mubr.f32.mxu0 0.0
      %957 = vmatmul.mubr.f32.gmra.mrb[0].mxu0 %v779
      %v958 = vpop.f32.mrb[0].mxu0
      %v959 = vadd.f32 %v749, %v958
      %v960 = vpop.f32.mrb[0].mxu0
      %961 = vmatprep.mubr.f32.mxu0 0.0
      %962 = vmatmul.mubr.f32.gmra.mrb[0].mxu0 %v782
      %v963 = vpop.f32.mrb[0].mxu0
      %v964 = vadd.f32 %v749, %v963
      %v965 = vpop.f32.mrb[0].mxu0
      %966 = vmatprep.mubr.f32.mxu0 0.0
      %967 = vmatmul.mubr.f32.gmra.mrb[0].mxu0 %v785
      %v968 = vpop.f32.mrb[0].mxu0
      %v969 = vadd.f32 %v749, %v968
      %v970 = vpop.f32.mrb[0].mxu0
      %971 = vmatprep.mubr.f32.mxu0 0.0
      %972 = vmatmul.mubr.f32.gmra.mrb[0].mxu0 %v788
      %v973 = vpop.f32.mrb[0].mxu0
      %v974 = vadd.f32 %v749, %v973
      %v975 = vpop.f32.mrb[0].mxu0
      %976 = vmatprep.mubr.f32.mxu0 0.0
      %977 = vmatmul.mubr.f32.gmra.mrb[0].mxu0 %v791
      %v978 = vpop.f32.mrb[0].mxu0
      %v979 = vadd.f32 %v749, %v978
      %v980 = vpop.f32.mrb[0].mxu0
      %981 = vmatprep.mubr.f32.mxu0 0.0
      %982 = vmatmul.mubr.f32.gmra.mrb[0].mxu0 %v794
      %v983 = vpop.f32.mrb[0].mxu0
      %v984 = vadd.f32 %v749, %v983
      %v985 = vpop.f32.mrb[0].mxu0
      %986 = vmatprep.mubr.f32.mxu0 0.0
      %987 = vmatmul.mubr.f32.gmra.mrb[0].mxu0 %v797
      %v988 = vpop.f32.mrb[0].mxu0
      %v989 = vadd.f32 %v749, %v988
      %v990 = vpop.f32.mrb[0].mxu0
      %991 = vmatprep.mubr.f32.mxu0 0.0
      %992 = vmatmul.mubr.f32.gmra.mrb[0].mxu0 %v800
      %v993 = vpop.f32.mrb[0].mxu0
      %v994 = vadd.f32 %v749, %v993
      %v995 = vpop.f32.mrb[0].mxu0
      %996 = vmatprep.mubr.f32.mxu0 0.0
      %997 = vmatmul.mubr.f32.gmra.mrb[0].mxu0 %v803
      %v998 = vpop.f32.mrb[0].mxu0
      %v999 = vadd.f32 %v749, %v998
      %v1000 = vpop.f32.mrb[0].mxu0
      %1001 = vmatprep.mubr.f32.mxu0 0.0
      %1002 = vmatmul.mubr.f32.gmra.mrb[0].mxu0 %v806
      %v1003 = vpop.f32.mrb[0].mxu0
      %v1004 = vadd.f32 %v749, %v1003
      %v1005 = vpop.f32.mrb[0].mxu0
      %1006 = vmatprep.mubr.f32.mxu0 0.0
      %1007 = vmatmul.mubr.f32.gmra.mrb[0].mxu0 %v809
      %v1008 = vpop.f32.mrb[0].mxu0
      %v1009 = vadd.f32 %v749, %v1008
      %v1010 = vpop.f32.mrb[0].mxu0
      %1011 = vmatprep.mubr.f32.mxu0 0.0
      %1012 = vmatmul.mubr.f32.gmra.mrb[0].mxu0 %v812
      %v1013 = vpop.f32.mrb[0].mxu0
      %v1014 = vadd.f32 %v749, %v1013
      %v1015 = vpop.f32.mrb[0].mxu0
      %1016 = vmatprep.mubr.f32.mxu0 0.0
      %1017 = vmatmul.mubr.f32.gmra.mrb[0].mxu0 %v815
      %v1018 = vpop.f32.mrb[0].mxu0
      %v1019 = vadd.f32 %v749, %v1018
      %v1020 = vpop.f32.mrb[0].mxu0
      %1021 = vmatprep.mubr.f32.mxu0 0.0
      %1022 = vmatmul.mubr.f32.gmra.mrb[0].mxu0 %v818
      %v1023 = vpop.f32.mrb[0].mxu0
      %v1024 = vadd.f32 %v749, %v1023
      %v1025 = vpop.f32.mrb[0].mxu0
      %1026 = vmatprep.mubr.f32.mxu0 0.0
      %1027 = vmatmul.mubr.f32.gmra.mrb[0].mxu0 %v821
      %v1028 = vpop.f32.mrb[0].mxu0
      %v1029 = vadd.f32 %v749, %v1028
      %v1030 = vpop.f32.mrb[0].mxu0
      %1031 = vmatprep.mubr.f32.mxu0 0.0
      %1032 = vmatmul.mubr.f32.gmra.mrb[0].mxu0 %v824
      %v1033 = vpop.f32.mrb[0].mxu0
      %v1034 = vadd.f32 %v749, %v1033
      %v1035 = vpop.f32.mrb[0].mxu0
      %1036 = vmatprep.mubr.f32.mxu0 0.0
      %1037 = vmatmul.mubr.f32.gmra.mrb[0].mxu0 %v827
      %v1038 = vpop.f32.mrb[0].mxu0
      %v1039 = vadd.f32 %v749, %v1038
      %v1040 = vpop.f32.mrb[0].mxu0
      %1041 = vmatprep.mubr.f32.mxu0 0.0
      %1042 = vmatmul.mubr.f32.gmra.mrb[0].mxu0 %v830
      %v1043 = vpop.f32.mrb[0].mxu0
      %v1044 = vadd.f32 %v749, %v1043
      %v1045 = vpop.f32.mrb[0].mxu0
      %1046 = vmatprep.mubr.f32.mxu0 0.0
      %1047 = vmatmul.mubr.f32.gmra.mrb[0].mxu0 %v833
      %v1048 = vpop.f32.mrb[0].mxu0
      %v1049 = vadd.f32 %v749, %v1048
      %v1050 = vpop.f32.mrb[0].mxu0
      %1051 = vmatprep.mubr.f32.mxu0 0.0
      %1052 = vmatmul.mubr.f32.gmra.mrb[0].mxu0 %v836
      %v1053 = vpop.f32.mrb[0].mxu0
      %v1054 = vadd.f32 %v749, %v1053
      %v1055 = vpop.f32.mrb[0].mxu0
      %1056 = vmatprep.mubr.f32.mxu0 0.0
      %1057 = vmatmul.mubr.f32.gmra.mrb[0].mxu0 %v839
      %v1058 = vpop.f32.mrb[0].mxu0
      %v1059 = vadd.f32 %v749, %v1058
      %v1060 = vpop.f32.mrb[0].mxu0
      %1061 = vmatprep.mubr.f32.mxu0 0.0
      %1062 = vmatmul.mubr.f32.gmra.mrb[0].mxu0 %v842
      %v1063 = vpop.f32.mrb[0].mxu0
      %v1064 = vadd.f32 %v749, %v1063
      %v1065 = vpop.f32.mrb[0].mxu0
      %1066 = vmatprep.mubr.f32.mxu0 0.0
      %1067 = vmatmul.mubr.f32.gmra.mrb[0].mxu0 %v845
      %v1068 = vpop.f32.mrb[0].mxu0
      %v1069 = vadd.f32 %v749, %v1068
      %v1070 = vpop.f32.mrb[0].mxu0
      %1071 = vdwg.mxu0
      %vm1072 = vcmask 7168
      %1073 = vst.msk [vmem:[%s277] sm:$0xff] %vm1072, %v914
      %1074 = vst.msk [vmem:[%s277 + $0x8] sm:$0xff] %vm1072, %v919
      %1075 = vst.msk [vmem:[%s277 + $0x10] sm:$0xff] %vm1072, %v924
      %1076 = vst.msk [vmem:[%s277 + $0x18] sm:$0xff] %vm1072, %v929
      %1077 = vst.msk [vmem:[%s277 + $0x20] sm:$0xff] %vm1072, %v934
      %1078 = vst.msk [vmem:[%s277 + $0x28] sm:$0xff] %vm1072, %v939
      %1079 = vst.msk [vmem:[%s277 + $0x30] sm:$0xff] %vm1072, %v944
      %1080 = vst.msk [vmem:[%s277 + $0x38] sm:$0xff] %vm1072, %v949
      %1081 = vst.msk [vmem:[%s277 + $0x40] sm:$0xff] %vm1072, %v954
      %1082 = vst.msk [vmem:[%s277 + $0x48] sm:$0xff] %vm1072, %v959
      %1083 = vst.msk [vmem:[%s277 + $0x50] sm:$0xff] %vm1072, %v964
      %1084 = vst.msk [vmem:[%s277 + $0x58] sm:$0xff] %vm1072, %v969
      %1085 = vst.msk [vmem:[%s277 + $0x60] sm:$0xff] %vm1072, %v974
      %1086 = vst.msk [vmem:[%s277 + $0x68] sm:$0xff] %vm1072, %v979
      %1087 = vst.msk [vmem:[%s277 + $0x70] sm:$0xff] %vm1072, %v984
      %1088 = vst.msk [vmem:[%s277 + $0x78] sm:$0xff] %vm1072, %v989
      %1089 = vst.msk [vmem:[%s277 + $0x80] sm:$0xff] %vm1072, %v994
      %1090 = vst.msk [vmem:[%s277 + $0x88] sm:$0xff] %vm1072, %v999
      %1091 = vst.msk [vmem:[%s277 + $0x90] sm:$0xff] %vm1072, %v1004
      %1092 = vst.msk [vmem:[%s277 + $0x98] sm:$0xff] %vm1072, %v1009
      %1093 = vst.msk [vmem:[%s277 + $0xa0] sm:$0xff] %vm1072, %v1014
      %1094 = vst.msk [vmem:[%s277 + $0xa8] sm:$0xff] %vm1072, %v1019
      %1095 = vst.msk [vmem:[%s277 + $0xb0] sm:$0xff] %vm1072, %v1024
      %1096 = vst.msk [vmem:[%s277 + $0xb8] sm:$0xff] %vm1072, %v1029
      %1097 = vst.msk [vmem:[%s277 + $0xc0] sm:$0xff] %vm1072, %v1034
      %1098 = vst.msk [vmem:[%s277 + $0xc8] sm:$0xff] %vm1072, %v1039
      %1099 = vst.msk [vmem:[%s277 + $0xd0] sm:$0xff] %vm1072, %v1044
      %1100 = vst.msk [vmem:[%s277 + $0xd8] sm:$0xff] %vm1072, %v1049
      %1101 = vst.msk [vmem:[%s277 + $0xe0] sm:$0xff] %vm1072, %v1054
      %1102 = vst.msk [vmem:[%s277 + $0xe8] sm:$0xff] %vm1072, %v1059
      %1103 = vst.msk [vmem:[%s277 + $0xf0] sm:$0xff] %vm1072, %v1064
      %1104 = vst.msk [vmem:[%s277 + $0xf8] sm:$0xff] %vm1072, %v1069
      %s1105 = smul.u32 32, %s19
      %p1106 = scmp.lt.s32.totalorder %s1105, 63
      %s1107 = scalar_select %p1106, %s1105, 63
      %s1108 = smul.addr %s1107, 8
      %s1109 = scalar_lea.vmem %s6, %s1108
      // Predicated region
      $region45: #{tpu_custom_call.1} parent=43 // pred_check
        %p1110 = pneg %p173
      $region46: #{tpu_custom_call.1} parent=43 // pred_check_branch
        %1112 = sbr.rel (%p1110) target = $region48
      $region47: #{tpu_custom_call.1} parent=43 // pred_region
        %s1113 = smul.u32 32, %s19
      $region48: #{tpu_custom_call.1} parent=43 // pred_fallthru
        _
    $region44: #{tpu_custom_call.1} parent=5 // pred_fallthru
      _
    %p1114 = scmp.le.s32.totalorder 2, %s14
    // Predicated region
    $region49: #{tpu_custom_call.1} parent=5 // pred_check
      %p1115 = pneg %p1114
    $region50: #{tpu_custom_call.1} parent=5 // pred_check_branch
      %1117 = sbr.rel (%p1115) target = $region52
    $region51: #{tpu_custom_call.1} parent=5 // pred_region
      %s1118 = ssub.s32 %s14, 2
      // Predicated region
      $region53: #{tpu_custom_call.1} parent=51 // pred_check
        %p1119 = pneg %p179
      $region54: #{tpu_custom_call.1} parent=51 // pred_check_branch
        %1121 = sbr.rel (%p1119) target = $region56
      $region55: #{tpu_custom_call.1} parent=51 // pred_region
        %s1122 = smul.u32 32, %s20
        %p1123 = scmp.lt.s32.totalorder %s1122, 63
        %s1124 = scalar_select %p1123, %s1122, 63
        %s1125 = smul.addr %s1124, 8
        %s1126 = scalar_lea.vmem %s6, %s1125
      $region56: #{tpu_custom_call.1} parent=51 // pred_fallthru
        _
    $region52: #{tpu_custom_call.1} parent=5 // pred_fallthru
      _
  $region6: #{tpu_custom_call.1} parent=0 // loop_footer
    %s18 = sadd.s32 1, %s14
  $region7: #{tpu_custom_call.1} parent=0 // loop_footer_branch
    %13 = sbr.rel target = $region3
  $region8: #{tpu_custom_call.1} parent=0 // loop_exit
    _

</llo_original>
